<compile_context>
chip_gen: v6e
topology: v6e:2x2x1
jax: 0.10.0
libtpu: 0.0.40
codegen_flags: <defaults>
</compile_context>

<pallas_src>
import functools

import jax
import jax.numpy as jnp
from jax.experimental import pallas as pl
from jax.experimental.pallas import tpu as pltpu


def make_cross_decode_mask(dim_kv: int, dim_q: int, span=None) -> jnp.ndarray:
    """Plain-JAX reference of the PyTorch __init__ mask (float32, 0 / -inf)."""
    row = jnp.arange(dim_q, dtype=jnp.int32)[:, None]   # (dim_q, 1)
    col = jnp.arange(dim_kv, dtype=jnp.int32)[None, :]  # (1, dim_kv)
    is_zero = (row * dim_kv) >= (col * dim_q)
    if span is not None:
        # torch's (col*dim_q/dim_kv).to(int): truncation toward zero == floor
        # for non-negative values.
        is_zero = jnp.logical_and(is_zero, row < (col * dim_q) // dim_kv + span)
    return jnp.where(is_zero, 0.0, -jnp.inf).astype(jnp.float32)


def _cross_decode_mask_kernel(x_ref, o_ref, *, dim_q, dim_kv, span):
    """x_ref/o_ref: (tb, tq, tkv) tile of x; mask generated on the fly (2-D)."""
    _, tq, tkv = x_ref.shape
    q0 = pl.program_id(1) * tq          # global row offset of this tile
    k0 = pl.program_id(2) * tkv         # global col offset of this tile

    # 2-D mask plane; broadcast over the block batch dim when adding.
    row = q0 + jax.lax.broadcasted_iota(jnp.int32, (tq, tkv), 0)
    col = k0 + jax.lax.broadcasted_iota(jnp.int32, (tq, tkv), 1)

    # TODO(synk): row*dim_kv / col*dim_q overflow int32 if dim_q*dim_kv ~ 2^31
    # (torch builds the mask in int64); acceptable for realistic seq lengths.
    col_q = col * dim_q
    is_zero = (row * dim_kv) >= col_q
    if span is not None:
        # row < floor(col*dim_q/dim_kv)+span  <=>  (row-span+1)*dim_kv <= col*dim_q
        # (exact for non-negative operands; avoids per-element int32 divide)
        is_zero = jnp.logical_and(is_zero, (row - (span - 1)) * dim_kv <= col_q)

    mask = jnp.where(is_zero, 0.0, -jnp.inf).astype(o_ref.dtype)
    o_ref[...] = x_ref[...] + mask[None, :, :]   # same semantics as torch x + mask


def _round_down(v: int, m: int) -> int:
    return (v // m) * m


def _vmem_budgets():
    """(per-buffer block budget, scoped-VMEM limit) — generation aware."""
    try:
        vmem = pltpu.get_tpu_info().vmem_capacity_bytes
    except Exception:
        vmem = 64 << 20                      # conservative (v7x-sized) fallback
    if vmem >= (128 << 20):                  # v5e / v6e: 128 MiB physical VMEM
        return 8 << 20, 64 << 20             # big blocks amortize per-step cost
    return 4 << 20, 32 << 20                 # v7x: 64 MiB per TC -> cap blocks


def _choose_tiles(B, dim_q, dim_kv, itemsize, budget):
    """Pick (tb, tq, tkv). Last two dims are either full dims or (sub,128)-aligned."""
    sub = {4: 8, 2: 16, 1: 32}.get(itemsize, 8)   # sublane packing multiple

    if B * dim_q * dim_kv * itemsize <= budget:    # whole tensor: one grid step
        return B, dim_q, dim_kv

    plane_bytes = dim_q * dim_kv * itemsize
    if plane_bytes <= budget:                      # fold batch, full plane/block
        tb = min(B, budget // plane_bytes)
        while tb > 1 and B % tb:                   # keep tb a divisor of B
            tb -= 1
        return tb, dim_q, dim_kv

    row_bytes = dim_kv * itemsize
    if row_bytes * sub <= budget:                  # full-row KV: contiguous DMA
        tq = _round_down(budget // row_bytes, sub)
        return 1, min(tq, dim_q), dim_kv

    # Very wide KV rows: tile both q and kv (lane/sublane aligned).
    tkv = max(128, _round_down(budget // (sub * itemsize), 128))
    tkv = min(tkv, dim_kv)
    tq = max(sub, _round_down(budget // (tkv * itemsize), sub))
    tq = min(tq, dim_q)
    return 1, tq, tkv


def cross_decode_mask_forward(x: jnp.ndarray, span=None, *,
                              block_budget_bytes=None,
                              donate_x: bool = False) -> jnp.ndarray:
    """x: (B, dim_q, dim_kv) float; returns x + cross-decode mask."""
    B, dim_q, dim_kv = x.shape
    budget, vmem_limit = _vmem_budgets()
    if block_budget_bytes is not None:             # test hook / manual override
        budget = block_budget_bytes

    tb, tq, tkv = _choose_tiles(B, dim_q, dim_kv, x.dtype.itemsize, budget)
    grid = (pl.cdiv(B, tb), pl.cdiv(dim_q, tq), pl.cdiv(dim_kv, tkv))

    kernel = functools.partial(
        _cross_decode_mask_kernel, dim_q=dim_q, dim_kv=dim_kv, span=span
    )

    return pl.pallas_call(
        kernel,
        out_shape=jax.ShapeDtypeStruct(x.shape, x.dtype),
        grid_spec=pltpu.PrefetchScalarGridSpec(
            num_scalar_prefetch=0,
            grid=grid,
            in_specs=[pl.BlockSpec((tb, tq, tkv), lambda b, qi, ki: (b, qi, ki))],
            out_specs=pl.BlockSpec((tb, tq, tkv), lambda b, qi, ki: (b, qi, ki)),
        ),
        compiler_params=pltpu.CompilerParams(
            # No reduction axis -> all parallel (enables v7x megacore sharding).
            # TODO(synk): profile on v7x; if the grid does not shard across both
            # TensorCores, switch the q axis to pltpu.CORE_PARALLEL.
            dimension_semantics=("parallel", "parallel", "parallel"),
            vmem_limit_bytes=vmem_limit,
        ),
        input_output_aliases=({0: 0} if donate_x else {}),
    )(x)


def _allclose_with_inf(out: jnp.ndarray, ref: jnp.ndarray) -> bool:
    neg = jnp.isneginf(ref)
    ok = jnp.where(neg, jnp.isneginf(out), jnp.abs(out - ref) < 1e-6)
    return bool(jnp.all(ok))


if __name__ == "__main__":
    key = jax.random.PRNGKey(0)
    k_small, k_mid = jax.random.split(key)

    # --- small demo shape (single-block fast path) --------------------------
    B, dim_q, dim_kv = 2, 8, 16
    x = jax.random.normal(k_small, (B, dim_q, dim_kv), dtype=jnp.float32)

    out = jax.block_until_ready(cross_decode_mask_forward(x))
    ref = x + make_cross_decode_mask(dim_kv, dim_q)[None, :, :]
    assert out.shape == x.shape
    assert _allclose_with_inf(out, ref)

    # span branch (division-free in-kernel formulation)
    out_s = jax.block_until_ready(cross_decode_mask_forward(x, span=3))
    ref_s = x + make_cross_decode_mask(dim_kv, dim_q, span=3)[None, :, :]
    assert _allclose_with_inf(out_s, ref_s)

    # --- exercise tiled + ragged-edge paths with a forced tiny block budget
    #     (keeps shapes small while covering the production tiling code) -----
    B2, q2, kv2 = 2, 72, 200
    x2 = jax.random.normal(k_mid, (B2, q2, kv2), dtype=jnp.float32)
    ref2 = x2 + make_cross_decode_mask(kv2, q2)[None, :, :]
    ref2_s = x2 + make_cross_decode_mask(kv2, q2, span=5)[None, :, :]

    # full-row-KV blocks, ragged q edge (tq=16, dim_q=72)
    out2 = jax.block_until_ready(
        cross_decode_mask_forward(x2, block_budget_bytes=16 << 10))
    assert _allclose_with_inf(out2, ref2)

    # both axes tiled (tkv=128 < 200, ragged kv edge) + span path
    out3 = jax.block_until_ready(
        cross_decode_mask_forward(x2, span=5, block_budget_bytes=4 << 10))
    assert _allclose_with_inf(out3, ref2_s)

    print("KERNEL_OK")
</pallas_src>

<mosaic_0001>
module attributes {stable_mosaic.version = 11 : i64} {
  func.func @_cross_decode_mask_kernel(%arg0: i32, %arg1: i32, %arg2: i32, %arg3: memref<2x8x16xf32, #tpu.memory_space<vmem>>, %arg4: memref<2x8x16xf32, #tpu.memory_space<vmem>>) attributes {dimension_semantics = [#tpu.dimension_semantics<parallel>, #tpu.dimension_semantics<parallel>, #tpu.dimension_semantics<parallel>], iteration_bounds = array<i64: 1, 1, 1>, scalar_prefetch = 0 : i64, scratch_operands = 0 : i64, tpu.core_type = #tpu.core_type<tc>, window_params = [{transform_indices = @transform_0, window_bounds = array<i64: 2, 8, 16>}, {transform_indices = @transform_1, window_bounds = array<i64: 2, 8, 16>}]} {
    %c8_i32 = arith.constant 8 : i32
    %0 = arith.muli %arg1, %c8_i32 : i32
    %c16_i32 = arith.constant 16 : i32
    %1 = arith.muli %arg2, %c16_i32 : i32
    %2 = tpu.iota {dimensions = array<i32: 0>} : vector<8x16xi32>
    %3 = vector.broadcast %0 : i32 to vector<8x16xi32>
    %4 = arith.addi %3, %2 : vector<8x16xi32>
    %5 = tpu.iota {dimensions = array<i32: 1>} : vector<8x16xi32>
    %6 = vector.broadcast %1 : i32 to vector<8x16xi32>
    %7 = arith.addi %6, %5 : vector<8x16xi32>
    %c8_i32_0 = arith.constant 8 : i32
    %8 = vector.broadcast %c8_i32_0 : i32 to vector<8x16xi32>
    %9 = arith.muli %7, %8 : vector<8x16xi32>
    %c16_i32_1 = arith.constant 16 : i32
    %10 = vector.broadcast %c16_i32_1 : i32 to vector<8x16xi32>
    %11 = arith.muli %4, %10 : vector<8x16xi32>
    %12 = arith.cmpi sge, %11, %9 : vector<8x16xi32>
    %cst = arith.constant 0.000000e+00 : f32
    %cst_2 = arith.constant 0xFF800000 : f32
    %13 = vector.broadcast %cst : f32 to vector<8x16xf32>
    %14 = vector.broadcast %cst_2 : f32 to vector<8x16xf32>
    %15 = arith.select %12, %13, %14 : vector<8x16xi1>, vector<8x16xf32>
    %c0 = arith.constant 0 : index
    %c0_3 = arith.constant 0 : index
    %c0_4 = arith.constant 0 : index
    %16 = vector.load %arg3[%c0, %c0_3, %c0_4] : memref<2x8x16xf32, #tpu.memory_space<vmem>>, vector<2x8x16xf32>
    %17 = vector.shape_cast %15 : vector<8x16xf32> to vector<1x8x16xf32>
    %18 = vector.broadcast %17 : vector<1x8x16xf32> to vector<2x8x16xf32>
    %19 = arith.addf %16, %18 : vector<2x8x16xf32>
    %c0_5 = arith.constant 0 : index
    %c0_6 = arith.constant 0 : index
    %c0_7 = arith.constant 0 : index
    %20 = vector.load %arg4[%c0_5, %c0_6, %c0_7] : memref<2x8x16xf32, #tpu.memory_space<vmem>>, vector<2x8x16xf32>
    tpu.vector_store %arg4[%c0_5, %c0_6, %c0_7], %19 {strides = array<i32>} : memref<2x8x16xf32, #tpu.memory_space<vmem>>, vector<2x8x16xf32>,
    return
  }
  func.func @transform_0(%arg0: i32, %arg1: i32, %arg2: i32) -> (i32, i32, i32) {
    %c0_i32 = arith.constant 0 : i32
    return %arg0, %arg1, %arg2 : i32, i32, i32
  }
  func.func @transform_1(%arg0: i32, %arg1: i32, %arg2: i32) -> (i32, i32, i32) {
    %c0_i32 = arith.constant 0 : i32
    return %arg0, %arg1, %arg2 : i32, i32, i32
  }
}

</mosaic_0001>

<llo_original>
// kernel: tpu_custom_call.1
$region0: #{tpu_custom_call.1}
  #allocation0 [shape = 'u32[]', space=smem, size = 0x4, offset = 0x4, fixed_abs, tag = 'smem constant byte address 0x4 - core index']
  #allocation1 [shape = 'u32[144,128]{1,0:T(1,128)}', space=vmem, size = 0x12000, scoped, tag = 'internal scratch']
  %s0 = inlined_call_operand.hbm [shape: f32[2,8,16], index: 0, kind: input, shape index: {}]
  %s1 = inlined_call_operand.hbm [shape: f32[2,8,16], index: 1, kind: output, shape index: {}]
  %s2 = sld [smem:[#allocation0]]
  $region18: #{tpu_custom_call.1} parent=0
    _
  %s4 = ssub.s32 1, %s2
  %s5 = scalar_select 0, %s4, %s2
  $region1: #{tpu_custom_call.1} parent=0
    #allocation2 [shape = 'u8[8192]{0}', space=vmem, size = 0x2000, scoped, tag = 'input window, operand 0, single buffered']
    #allocation3 [shape = 's32[1]{0}', space=sflag, size = 0x4, scoped, tag = 'scoped memory for tpu_custom_call.1']
    #allocation4 [shape = 's32[1]{0}', space=sflag, size = 0x4, scoped, tag = 'scoped memory for tpu_custom_call.1']
    #allocation5 [shape = 'u8[8192]{0}', space=vmem, size = 0x2000, scoped, tag = 'output window, operand 0, single buffered']
    %6 = vsyncpa [#allocation3], 0
    %7 = vsyncpa [#allocation4], 0
    // Predicated region
    $region2: #{tpu_custom_call.1} parent=1 // pred_check
      _
    $region3: #{tpu_custom_call.1} parent=1 // pred_check_branch
      %9 = sbr.rel (0) target = $region5
    $region4: #{tpu_custom_call.1} parent=1 // pred_region
      %s11 = ssub.s32 256, 256
      %12 = vsyncadd [#allocation3], %s11
      %s13 = sshll.u32 [#allocation2], 4
      %s14 = int_to_ptr.vmem [resolvable:$true] %s13
      %19 = dma.hbm_to_vmem [thread:$0]  %s0, 256, %s14, [#allocation3], 128, 128, 8
    $region5: #{tpu_custom_call.1} parent=1 // pred_fallthru
      _
    // Predicated region
    $region6: #{tpu_custom_call.1} parent=1 // pred_check
      _
    $region7: #{tpu_custom_call.1} parent=1 // pred_check_branch
      %21 = sbr.rel (0) target = $region9
    $region8: #{tpu_custom_call.1} parent=1 // pred_region
      %22 = dma.done [#allocation3], 256
    $region9: #{tpu_custom_call.1} parent=1 // pred_fallthru
      _
    %s23 = smul.u32 0, 8
    %s24 = smul.u32 0, 16
    %v25 = vlaneseq
    %v26 = vshrl.u32 %v25, 7
    %v27 = vstv %s23
    %v28 = vadd.s32 %v27, %v26
    %v29 = vlaneseq
    %v30 = vand.u32 %v29, 127
    %v31 = vstv %s24
    %v32 = vadd.s32 %v31, %v30
    %v33 = vmul.u32 %v32, 8
    %v34 = vmul.u32 %v28, 16
    %vm35 = vcmp.ge.s32.totalorder %v34, %v33
    %v36 = vsel %vm35, 0.0, -inf
    %v37 = vld [vmem:[#allocation2] sm:$0xff]
    %v38 = vld [vmem:[#allocation2 + $0x8] sm:$0xff]
    %v39 = vadd.f32 %v37, %v36
    %v40 = vadd.f32 %v38, %v36
    %vm41 = vcmask 130048
    %42 = vst.msk [vmem:[#allocation5] sm:$0xff] %vm41, %v39
    %43 = vst.msk [vmem:[#allocation5 + $0x8] sm:$0xff] %vm41, %v40
    // Predicated region
    $region10: #{tpu_custom_call.1} parent=1 // pred_check
      _
    $region11: #{tpu_custom_call.1} parent=1 // pred_check_branch
      %45 = sbr.rel (0) target = $region13
    $region12: #{tpu_custom_call.1} parent=1 // pred_region
      %s47 = ssub.s32 256, 256
      %48 = vsyncadd [#allocation4], %s47
      %s49 = sshll.u32 [#allocation5], 4
      %s50 = int_to_ptr.vmem [resolvable:$true] %s49
      %55 = dma.vmem_to_hbm [thread:$0]  %s50, 256, %s1, [#allocation4], 128, 128, 8
    $region13: #{tpu_custom_call.1} parent=1 // pred_fallthru
      _
    // Predicated region
    $region14: #{tpu_custom_call.1} parent=1 // pred_check
      _
    $region15: #{tpu_custom_call.1} parent=1 // pred_check_branch
      %57 = sbr.rel (0) target = $region17
    $region16: #{tpu_custom_call.1} parent=1 // pred_region
      %58 = dma.done [#allocation4], 256
    $region17: #{tpu_custom_call.1} parent=1 // pred_fallthru
      _
    %59 = vsyncpa [#allocation3], 1
    %60 = vsyncpa [#allocation4], 1

</llo_original>
